<compile_context>
chip_gen: v5e
topology: v5e:2x2
jax: 0.10.0
libtpu: 0.0.40
codegen_flags: <defaults>
</compile_context>

<pallas_src>
import jax
import jax.numpy as jnp
from jax.experimental import pallas as pl
from jax.experimental.pallas import tpu as pltpu


_FAST_PATH_BYTES = 256 * 1024          # below this, a kernel launch costs more than it saves
_TARGET_BLOCK_BYTES = 2 * 1024 * 1024  # ~2 MiB blocks: safe on v7x's 64 MiB VMEM, roofline on all gens
_LANE_WIDTHS = (4096, 2048, 1024, 512, 256, 128)


def _copy_kernel(x_ref, o_ref):
    # Pure passthrough: one vreg-wide load + store per tile.
    o_ref[...] = x_ref[...]


def skip_normal(x, *, force_kernel: bool = False):
    """Forward pass of Skip_normal (identity).

    Default path is the free identity (return x). `force_kernel=True` routes the
    copy through the tiled Pallas kernel (used here to exercise it on-device).
    """
    total = 1
    for d in x.shape:
        total *= int(d)
    itemsize = jnp.dtype(x.dtype).itemsize
    total_bytes = total * itemsize

    # Fast path: identity is free; don't launch a kernel for tiny skips.
    if not force_kernel and total_bytes <= _FAST_PATH_BYTES:
        return x

    # Lane-dense 2D view: cols = largest multiple of 128 dividing the element count.
    cols = None
    for c in _LANE_WIDTHS:
        if total >= c and total % c == 0:
            cols = c
            break
    if cols is None:
        # Irregular element count: identity semantics are preserved exactly by
        # returning x; no kernel needed for this shape.
        return x
    rows = total // cols
    x2 = x.reshape(rows, cols)

    # Tile the row axis into ~2 MiB blocks (multiple of 16 rows: friendly to both
    # f32 (8-row) and bf16 (16-row packed) sublane tiling).
    row_bytes = cols * itemsize
    max_tm = max(1, _TARGET_BLOCK_BYTES // row_bytes)
    if rows <= max_tm:
        tm = rows  # single block equals full row extent -> always layout-legal
    else:
        tm = max(16, (max_tm // 16) * 16)
    num_blocks = pl.cdiv(rows, tm)

    in_spec_kwargs = {}
    if num_blocks >= 3:
        # Pure copy has no compute to hide DMA latency behind; keep 3 DMAs in flight.
        in_spec_kwargs["pipeline_mode"] = pl.Buffered(3)

    out2 = pl.pallas_call(
        _copy_kernel,
        out_shape=jax.ShapeDtypeStruct((rows, cols), x.dtype),
        grid_spec=pltpu.PrefetchScalarGridSpec(
            num_scalar_prefetch=0,
            grid=(num_blocks,),
            in_specs=[pl.BlockSpec((tm, cols), lambda i: (i, 0), **in_spec_kwargs)],
            out_specs=pl.BlockSpec((tm, cols), lambda i: (i, 0)),
        ),
        compiler_params=pltpu.CompilerParams(
            dimension_semantics=("parallel",),  # v7x: shard grid over both TCs; no-op on v5e/v6e
        ),
        # Identity copy: let XLA reuse the input buffer for the output (it inserts a
        # copy itself if the operand is still live elsewhere, so semantics are safe).
        input_output_aliases={0: 0},
    )(x2)

    return out2.reshape(x.shape)


if __name__ == "__main__":
    key = jax.random.PRNGKey(0)
    # NCHW input, consistent with the PyTorch module's conv-style usage.
    x = jax.random.normal(key, (2, 4, 16, 16), dtype=jnp.float32)

    # 1) Default path for tiny inputs: no kernel launch, pure identity.
    y_fast = jax.block_until_ready(skip_normal(x))
    assert y_fast.shape == x.shape and y_fast.dtype == x.dtype
    assert bool(jnp.all(y_fast == x))

    # 2) Exercise the Pallas kernel path once on TPU.
    y_kern = jax.block_until_ready(skip_normal(x, force_kernel=True))
    assert y_kern.shape == x.shape and y_kern.dtype == x.dtype
    assert bool(jnp.all(y_kern == x))

    print("KERNEL_OK")
</pallas_src>

<mosaic_0001>
module attributes {stable_mosaic.version = 11 : i64} {
  func.func @_copy_kernel(%arg0: i32, %arg1: memref<1x2048xf32, #tpu.memory_space<vmem>>, %arg2: memref<1x2048xf32, #tpu.memory_space<vmem>>) attributes {dimension_semantics = [#tpu.dimension_semantics<parallel>], iteration_bounds = array<i64: 1>, scalar_prefetch = 0 : i64, scratch_operands = 0 : i64, tpu.core_type = #tpu.core_type<tc>, window_params = [{transform_indices = @transform_0, window_bounds = array<i64: 1, 2048>}, {transform_indices = @transform_1, window_bounds = array<i64: 1, 2048>}]} {
    %c0 = arith.constant 0 : index
    %c0_0 = arith.constant 0 : index
    %0 = vector.load %arg1[%c0, %c0_0] : memref<1x2048xf32, #tpu.memory_space<vmem>>, vector<1x2048xf32>
    %c0_1 = arith.constant 0 : index
    %c0_2 = arith.constant 0 : index
    %1 = vector.load %arg2[%c0_1, %c0_2] : memref<1x2048xf32, #tpu.memory_space<vmem>>, vector<1x2048xf32>
    tpu.vector_store %arg2[%c0_1, %c0_2], %0 {strides = array<i32>} : memref<1x2048xf32, #tpu.memory_space<vmem>>, vector<1x2048xf32>,
    return
  }
  func.func @transform_0(%arg0: i32) -> (i32, i32) {
    %c0_i32 = arith.constant 0 : i32
    %c0_i32_0 = arith.constant 0 : i32
    return %arg0, %c0_i32 : i32, i32
  }
  func.func @transform_1(%arg0: i32) -> (i32, i32) {
    %c0_i32 = arith.constant 0 : i32
    %c0_i32_0 = arith.constant 0 : i32
    return %arg0, %c0_i32 : i32, i32
  }
}

</mosaic_0001>

<llo_original>
// kernel: tpu_custom_call.1
$region0: #{tpu_custom_call.1}
  #allocation0 [shape = 'u32[]', space=smem, size = 0x4, offset = 0x4, fixed_abs, tag = 'smem constant byte address 0x4 - core index']
  #allocation1 [shape = 'u32[72,128]{1,0:T(1,128)}', space=vmem, size = 0x9000, scoped, tag = 'internal scratch']
  %s0 = inlined_call_operand.hbm [shape: f32[1,2048], index: 0, kind: input, shape index: {}, may-alias: {0,1}]
  %s1 = inlined_call_operand.hbm [shape: f32[1,2048], index: 1, kind: output, shape index: {}, may-alias: {0,1}]
  %s2 = sld [smem:[#allocation0]]
  $region18: #{tpu_custom_call.1} parent=0
    _
  %s4 = ssub.s32 1, %s2
  %s5 = scalar_select 0, %s4, %s2
  $region1: #{tpu_custom_call.1} parent=0
    #allocation2 [shape = 'u8[8192]{0}', space=vmem, size = 0x2000, scoped, tag = 'input window, operand 0, single buffered']
    #allocation3 [shape = 's32[1]{0}', space=sflag, size = 0x4, scoped, tag = 'scoped memory for tpu_custom_call.1']
    #allocation4 [shape = 's32[1]{0}', space=sflag, size = 0x4, scoped, tag = 'scoped memory for tpu_custom_call.1']
    #allocation5 [shape = 'u8[8192]{0}', space=vmem, size = 0x2000, scoped, tag = 'output window, operand 0, single buffered']
    %6 = vsyncpa [#allocation3], 0
    %7 = vsyncpa [#allocation4], 0
    // Predicated region
    $region2: #{tpu_custom_call.1} parent=1 // pred_check
      _
    $region3: #{tpu_custom_call.1} parent=1 // pred_check_branch
      %9 = sbr.rel (0) target = $region5
    $region4: #{tpu_custom_call.1} parent=1 // pred_region
      %11 = vsyncadd [#allocation3], 0
      %s13 = sshll.u32 %s0, 4
      %s14 = int_to_ptr.hbm [resolvable:$true] %s13
      %s15 = sshll.u32 [#allocation2], 4
      %s16 = int_to_ptr.vmem [resolvable:$true] %s15
      %18 = dma.hbm_to_vmem [thread:$0]  %s14, 256, %s16, [#allocation3]
    $region5: #{tpu_custom_call.1} parent=1 // pred_fallthru
      _
    // Predicated region
    $region6: #{tpu_custom_call.1} parent=1 // pred_check
      _
    $region7: #{tpu_custom_call.1} parent=1 // pred_check_branch
      %20 = sbr.rel (0) target = $region9
    $region8: #{tpu_custom_call.1} parent=1 // pred_region
      %22 = dma.done [#allocation3], 256
    $region9: #{tpu_custom_call.1} parent=1 // pred_fallthru
      _
    %v23 = vld [vmem:[#allocation2] sm:$0xff]
    %v24 = vld [vmem:[#allocation2 + $0x8] sm:$0xff]
    %25 = vst [vmem:[#allocation5] sm:$0xff] %v23
    %26 = vst [vmem:[#allocation5 + $0x8] sm:$0xff] %v24
    // Predicated region
    $region10: #{tpu_custom_call.1} parent=1 // pred_check
      _
    $region11: #{tpu_custom_call.1} parent=1 // pred_check_branch
      %28 = sbr.rel (0) target = $region13
    $region12: #{tpu_custom_call.1} parent=1 // pred_region
      %30 = vsyncadd [#allocation4], 0
      %s32 = sshll.u32 [#allocation5], 4
      %s33 = int_to_ptr.vmem [resolvable:$true] %s32
      %s34 = sshll.u32 %s1, 4
      %s35 = int_to_ptr.hbm [resolvable:$true] %s34
      %37 = dma.vmem_to_hbm [thread:$0]  %s33, 256, %s35, [#allocation4]
    $region13: #{tpu_custom_call.1} parent=1 // pred_fallthru
      _
    // Predicated region
    $region14: #{tpu_custom_call.1} parent=1 // pred_check
      _
    $region15: #{tpu_custom_call.1} parent=1 // pred_check_branch
      %39 = sbr.rel (0) target = $region17
    $region16: #{tpu_custom_call.1} parent=1 // pred_region
      %41 = dma.done [#allocation4], 256
    $region17: #{tpu_custom_call.1} parent=1 // pred_fallthru
      _
    %42 = vsyncpa [#allocation3], 1
    %43 = vsyncpa [#allocation4], 1

</llo_original>
